<compile_context>
chip_gen: v7x
topology: tpu7x:2x2x1
jax: 0.10.0
libtpu: 0.0.40
codegen_flags: <defaults>
</compile_context>

<pallas_src>
import jax
import jax.numpy as jnp
from jax.experimental import pallas as pl
from jax.experimental.pallas import tpu as pltpu

BN_EPS = 1e-5
LANE = 128                               # lane width / channel padding quantum
TM_CONV = 512                            # conv GEMM row tile (perf review: 512-1024)
VMEM_LIMIT_BYTES = 32 * 1024 * 1024      # safe on v5e/v6e and within v7x's 64 MiB


def _round_up(x, m):
    return ((x + m - 1) // m) * m


def _cdiv(a, b):
    return -(-a // b)


def _pad2d(a, rows, cols):
    r, c = a.shape
    if r == rows and c == cols:
        return a
    return jnp.pad(a, ((0, rows - r), (0, cols - c)))


def _pack_scale_bias(scale, bias, ncp):
    # single (2, Cout_padded) operand -> one small DMA per Cout tile instead of two
    sb = jnp.stack([scale, bias], axis=0).astype(jnp.float32)
    return _pad2d(sb, 2, ncp)


# ----------------------------------------------------------------------------
# Pallas kernels
# ----------------------------------------------------------------------------
def _make_tap_conv_kernel(offsets, cp, tm, apply_relu, has_residual):
    """Stride-1 3x3 conv as 9 shifted matmuls on VMEM-resident row blocks.

    The LHS is a (tm, cp) row block of the flattened spatially-padded input plus
    a (hb, cp) halo block; tap (kh, kw) is the static row offset d = kh*Wp + kw.
    Fused epilogue: folded-BN affine (+ residual) (+ ReLU), f32 accumulation.
    """
    def kernel(*refs):
        if has_residual:
            xm_ref, xh_ref, w_ref, sb_ref, r_ref, o_ref = refs
        else:
            xm_ref, xh_ref, w_ref, sb_ref, o_ref = refs
            r_ref = None
        xcomb = jnp.concatenate([xm_ref[...], xh_ref[...]], axis=0)   # (tm+hb, cp) bf16
        w = w_ref[...]                                                # (9*cp, tn)  bf16
        sb = sb_ref[...]                                              # (2, tn)     f32
        tn = w.shape[1]
        acc = jnp.zeros((tm, tn), jnp.float32)
        for t, d in enumerate(offsets):                               # 9 taps, static unroll
            lhs = xcomb[d:d + tm, :]                                  # static shifted slice
            acc = acc + jnp.dot(lhs, w[t * cp:(t + 1) * cp, :],
                                preferred_element_type=jnp.float32)
        y = acc * sb[0:1, :] + sb[1:2, :]
        if has_residual:
            y = y + r_ref[...].astype(jnp.float32)
        if apply_relu:
            y = jnp.maximum(y, 0.0)
        o_ref[...] = y.astype(o_ref.dtype)
    return kernel


def _make_im2col_kernel(apply_relu, has_residual):
    """Tiled im2col-GEMM (stem / stride-2 / 1x1 downsample) with f32 scratch acc."""
    def kernel(*refs):
        if has_residual:
            p_ref, w_ref, sb_ref, r_ref, o_ref, acc_ref = refs
        else:
            p_ref, w_ref, sb_ref, o_ref, acc_ref = refs
            r_ref = None
        k = pl.program_id(2)

        @pl.when(k == 0)
        def _():
            acc_ref[...] = jnp.zeros_like(acc_ref)

        acc_ref[...] += jnp.dot(p_ref[...], w_ref[...],
                                preferred_element_type=jnp.float32)

        @pl.when(k == pl.num_programs(2) - 1)
        def _():
            sb = sb_ref[...]
            y = acc_ref[...] * sb[0:1, :] + sb[1:2, :]
            if has_residual:
                y = y + r_ref[...].astype(jnp.float32)
            if apply_relu:
                y = jnp.maximum(y, 0.0)
            o_ref[...] = y.astype(o_ref.dtype)
    return kernel


def _maxpool_kernel(x_ref, o_ref):
    """Stride-1 sliding 3x3 max over one padded image (separable row/col max)."""
    x = x_ref[0]                                           # (H+2, W+2, C)
    hs = o_ref.shape[1]
    ws = o_ref.shape[2]
    a = jnp.maximum(jnp.maximum(x[0:hs], x[1:hs + 1]), x[2:hs + 2])
    o_ref[0] = jnp.maximum(jnp.maximum(a[:, 0:ws], a[:, 1:ws + 1]),
                           a[:, 2:ws + 2])


def _make_head_kernel(inv_hw):
    """Global average pool (accumulated over HW chunks) + FC, fused."""
    def kernel(f_ref, w_ref, b_ref, o_ref, acc_ref):
        s = pl.program_id(0)

        @pl.when(s == 0)
        def _():
            acc_ref[...] = jnp.zeros_like(acc_ref)

        acc_ref[...] += jnp.sum(f_ref[...].astype(jnp.float32), axis=1)

        @pl.when(s == pl.num_programs(0) - 1)
        def _():
            pooled = acc_ref[...] * inv_hw
            o_ref[...] = (jnp.dot(pooled, w_ref[...],
                                  preferred_element_type=jnp.float32) + b_ref[...])
    return kernel


# ----------------------------------------------------------------------------
# Conv wrappers
# ----------------------------------------------------------------------------
def _conv_bn_tap(x, w, scale, bias, *, relu, residual):
    """Stride-1 3x3 conv + folded BN (+res)(+ReLU) without an HBM im2col."""
    n, h, wd, cp = x.shape                 # cp is a multiple of 128, padded chans are 0
    _, _, cin, cout = w.shape
    hp, wp = h + 2, wd + 2
    ncp = _round_up(cout, LANE)
    tn = 256 if ncp % 256 == 0 else LANE   # wider Cout tile for 256-wide MXU when legal
    mw = n * hp * wp                       # flattened "wide" rows (incl. pad positions)
    offsets = [kh * wp + kw for kh in range(3) for kw in range(3)]
    dmax = offsets[-1]
    hb = next(b for b in (64, 128, 256, TM_CONV) if b >= dmax)   # halo rows, divides tm

    tm = min(TM_CONV, _round_up(mw, hb))
    if _cdiv(mw, tm) * (ncp // tn) < 2 and mw > hb:
        tm = max(hb, _round_up(_cdiv(mw, 2), hb))   # >=2 parallel blocks (v7x megacore)
    mp = _round_up(mw, tm)
    rows_total = mp + hb                            # extra zero rows so halo never OOB

    xp = jnp.pad(x.astype(jnp.bfloat16), ((0, 0), (1, 1), (1, 1), (0, 0)))
    xflat = jnp.pad(xp.reshape(mw, cp), ((0, rows_total - mw), (0, 0)))

    wpad = jnp.pad(w, ((0, 0), (0, 0), (0, cp - cin), (0, ncp - cout)))
    wflat = wpad.reshape(9 * cp, ncp).astype(jnp.bfloat16)      # rows = (tap, cin)
    sb = _pack_scale_bias(scale, bias, ncp)

    bpt = tm // hb
    args = [xflat, xflat, wflat, sb]
    in_specs = [
        pl.BlockSpec((tm, cp), lambda i, j: (i, 0)),                 # main rows (reused over j)
        pl.BlockSpec((hb, cp), lambda i, j: ((i + 1) * bpt, 0)),     # halo rows
        pl.BlockSpec((9 * cp, tn), lambda i, j: (0, j)),
        pl.BlockSpec((2, tn), lambda i, j: (0, j)),
    ]
    if residual is not None:
        r = jnp.pad(residual.astype(jnp.bfloat16), ((0, 0), (0, 2), (0, 2), (0, 0)))
        r = jnp.pad(r.reshape(mw, ncp), ((0, mp - mw), (0, 0)))
        args.append(r)
        in_specs.append(pl.BlockSpec((tm, tn), lambda i, j: (i, j)))

    out = pl.pallas_call(
        _make_tap_conv_kernel(offsets, cp, tm, relu, residual is not None),
        grid=(mp // tm, ncp // tn),
        in_specs=in_specs,
        out_specs=pl.BlockSpec((tm, tn), lambda i, j: (i, j)),
        out_shape=jax.ShapeDtypeStruct((mp, ncp), jnp.bfloat16),
        compiler_params=pltpu.CompilerParams(
            dimension_semantics=("parallel", "parallel"),
            vmem_limit_bytes=VMEM_LIMIT_BYTES),
    )(*args)
    # drop the rows that correspond to spatial padding / tile rounding
    return out[:mw].reshape(n, hp, wp, ncp)[:, :h, :wd, :]


def _im2col_taps(x, k, stride, pad):
    n, h, w, c = x.shape
    xp = jnp.pad(x, ((0, 0), (pad, pad), (pad, pad), (0, 0))) if pad > 0 else x
    ho = (h + 2 * pad - k) // stride + 1
    wo = (w + 2 * pad - k) // stride + 1
    taps = []
    for kh in range(k):
        for kw in range(k):
            taps.append(xp[:, kh:kh + stride * ho:stride,
                           kw:kw + stride * wo:stride, :])
    return taps, (n, ho, wo)


def _conv_bn_im2col(x, w, scale, bias, *, stride, pad, relu, residual):
    """im2col GEMM path: stem conv, stride-2 3x3 convs, 1x1 downsample."""
    k, _, cin, cout = w.shape
    x = x[..., :cin]                                 # drop lane padding (fused by XLA)
    taps, (n, ho, wo) = _im2col_taps(x.astype(jnp.bfloat16), k, stride, pad)
    m = n * ho * wo
    kdim = k * k * cin
    patches = jnp.concatenate(taps, axis=-1).reshape(m, kdim)

    ncp = _round_up(cout, LANE)
    tn = 256 if ncp % 256 == 0 else LANE
    if kdim <= LANE:                                 # e.g. stem conv K=27 -> 32, not 128
        kp = _round_up(kdim, 8)
        tk = kp
    else:
        kp = _round_up(kdim, LANE)
        tk = LANE

    tm = min(TM_CONV, _round_up(m, 16))
    if _cdiv(m, tm) * (ncp // tn) < 2 and m > 16:
        tm = max(16, _round_up(_cdiv(m, 2), 16))     # >=2 parallel blocks (v7x)
    mp = _round_up(m, tm)

    patches = _pad2d(patches, mp, kp)
    wflat = _pad2d(w.reshape(kdim, cout).astype(jnp.bfloat16), kp, ncp)
    sb = _pack_scale_bias(scale, bias, ncp)

    args = [patches, wflat, sb]
    in_specs = [
        pl.BlockSpec((tm, tk), lambda i, j, kk: (i, kk)),
        pl.BlockSpec((tk, tn), lambda i, j, kk: (kk, j)),
        pl.BlockSpec((2, tn), lambda i, j, kk: (0, j)),
    ]
    if residual is not None:
        r = _pad2d(residual.reshape(m, -1).astype(jnp.bfloat16), mp, ncp)
        args.append(r)
        in_specs.append(pl.BlockSpec((tm, tn), lambda i, j, kk: (i, j)))

    out = pl.pallas_call(
        _make_im2col_kernel(relu, residual is not None),
        grid=(mp // tm, ncp // tn, kp // tk),
        in_specs=in_specs,
        out_specs=pl.BlockSpec((tm, tn), lambda i, j, kk: (i, j)),
        out_shape=jax.ShapeDtypeStruct((mp, ncp), jnp.bfloat16),
        scratch_shapes=[pltpu.VMEM((tm, tn), jnp.float32)],
        compiler_params=pltpu.CompilerParams(
            dimension_semantics=("parallel", "parallel", "arbitrary"),
            vmem_limit_bytes=VMEM_LIMIT_BYTES),
    )(*args)
    return out[:m].reshape(n, ho, wo, ncp)


def conv_bn(x, w, scale, bias, *, stride, pad, relu, residual=None):
    """Conv (no bias) + folded BN (+ residual) (+ ReLU); returns NHWC bf16,
    Cout zero-padded to a multiple of 128 lanes."""
    k = w.shape[0]
    cp = x.shape[-1]
    wp = x.shape[2] + 2
    if (k == 3 and stride == 1 and pad == 1 and cp % LANE == 0
            and 2 * wp + 2 <= TM_CONV):
        return _conv_bn_tap(x, w, scale, bias, relu=relu, residual=residual)
    return _conv_bn_im2col(x, w, scale, bias, stride=stride, pad=pad,
                           relu=relu, residual=residual)


# ----------------------------------------------------------------------------
# MaxPool and head
# ----------------------------------------------------------------------------
def maxpool3x3_s2(x):
    """MaxPool2d(3, stride=2, padding=1).  Zero padding is exact here because the
    input is post-ReLU (>= 0).  The stride-2 subsample is done outside the kernel
    (a strided slice that XLA fuses into the next conv's padding)."""
    n, h, w, c = x.shape
    ho = (h - 1) // 2 + 1
    wo = (w - 1) // 2 + 1
    xp = jnp.pad(x.astype(jnp.bfloat16), ((0, 0), (1, 1), (1, 1), (0, 0)))
    out = pl.pallas_call(
        _maxpool_kernel,
        grid=(n,),
        in_specs=[pl.BlockSpec((1, h + 2, w + 2, c), lambda i: (i, 0, 0, 0))],
        out_specs=pl.BlockSpec((1, h, w, c), lambda i: (i, 0, 0, 0)),
        out_shape=jax.ShapeDtypeStruct((n, h, w, c), jnp.bfloat16),
        compiler_params=pltpu.CompilerParams(
            dimension_semantics=("parallel",),
            vmem_limit_bytes=VMEM_LIMIT_BYTES),
    )(xp)
    return out[:, 0:2 * ho:2, 0:2 * wo:2, :]


def avgpool_fc(x, fc_w, fc_b):
    """AdaptiveAvgPool2d((1,1)) + flatten + Linear, tiled over H*W chunks."""
    n, h, w, cp = x.shape
    hw = h * w
    feat = x.reshape(n, hw, cp).astype(jnp.bfloat16)
    cin, ncls = fc_w.shape
    nclsp = _round_up(ncls, LANE)
    wfc = _pad2d(fc_w.astype(jnp.float32), cp, nclsp)      # zero rows for padded channels
    bfc = _pad2d(fc_b.reshape(1, ncls).astype(jnp.float32), 1, nclsp)

    thw = min(512, _round_up(hw, 8))
    hwp = _round_up(hw, thw)
    if hwp != hw:                                           # zero rows don't affect the sum
        feat = jnp.pad(feat, ((0, 0), (0, hwp - hw), (0, 0)))

    out = pl.pallas_call(
        _make_head_kernel(1.0 / float(hw)),
        grid=(hwp // thw,),
        in_specs=[pl.BlockSpec((n, thw, cp), lambda s: (0, s, 0)),
                  pl.BlockSpec((cp, nclsp), lambda s: (0, 0)),
                  pl.BlockSpec((1, nclsp), lambda s: (0, 0))],
        out_specs=pl.BlockSpec((n, nclsp), lambda s: (0, 0)),
        out_shape=jax.ShapeDtypeStruct((n, nclsp), jnp.float32),
        scratch_shapes=[pltpu.VMEM((n, cp), jnp.float32)],
        compiler_params=pltpu.CompilerParams(
            dimension_semantics=("arbitrary",),
            vmem_limit_bytes=VMEM_LIMIT_BYTES),
    )(feat, wfc, bfc)
    return out[:, :ncls]


# ----------------------------------------------------------------------------
# Parameter initialization (deterministic, synthetic)
# ----------------------------------------------------------------------------
def _kaiming_conv(key, k, cin, cout):
    fan_out = cout * k * k                 # kaiming_normal_(mode='fan_out', relu)
    std = (2.0 / fan_out) ** 0.5
    return jax.random.normal(key, (k, k, cin, cout), jnp.float32) * std


def _bn_params(c):
    gamma = jnp.ones((c,), jnp.float32)
    beta = jnp.zeros((c,), jnp.float32)
    running_mean = jnp.zeros((c,), jnp.float32)
    running_var = jnp.ones((c,), jnp.float32)
    scale = gamma / jnp.sqrt(running_var + BN_EPS)
    bias = beta - running_mean * scale
    return scale, bias


def init_wideresnet_params(key, layers, n_classes, width=2, n_input_channels=3):
    keys = iter(jax.random.split(key, 128))
    params = {}
    in_planes = 16 * width
    params["conv1_w"] = _kaiming_conv(next(keys), 3, n_input_channels, in_planes)
    params["bn1"] = _bn_params(in_planes)

    stage_planes = [16 * width, 32 * width, 64 * width]
    stage_strides = [1, 2, 2]
    stages = []
    for planes, n_blocks, stride in zip(stage_planes, layers, stage_strides):
        blocks = []
        for bi in range(n_blocks):
            s = stride if bi == 0 else 1
            blk = {
                "stride": s,
                "conv1_w": _kaiming_conv(next(keys), 3, in_planes, planes),
                "bn1": _bn_params(planes),
                "conv2_w": _kaiming_conv(next(keys), 3, planes, planes),
                "bn2": _bn_params(planes),
            }
            if s != 1 or in_planes != planes:   # block.expansion (class attr) == 1
                blk["ds_w"] = _kaiming_conv(next(keys), 1, in_planes, planes)
                blk["ds_bn"] = _bn_params(planes)
            blocks.append(blk)
            in_planes = planes
        stages.append(blocks)
    params["stages"] = stages

    fc_in = 64 * width                      # 64 * width * block.expansion(=1)
    params["fc_w"] = (jax.random.normal(next(keys), (fc_in, n_classes), jnp.float32)
                      * (1.0 / fc_in ** 0.5))
    params["fc_b"] = jnp.zeros((n_classes,), jnp.float32)
    return params


# ----------------------------------------------------------------------------
# Forward pass (mirrors WideResNet._forward_impl)
# ----------------------------------------------------------------------------
def wideresnet_forward(params, x_nchw):
    x = jnp.transpose(x_nchw, (0, 2, 3, 1)).astype(jnp.float32)    # NCHW -> NHWC

    s1, b1 = params["bn1"]
    x = conv_bn(x, params["conv1_w"], s1, b1, stride=1, pad=1, relu=True)  # conv1+bn1+relu
    x = maxpool3x3_s2(x)                                                   # maxpool

    for blocks in params["stages"]:                                        # layer1..3
        for blk in blocks:
            identity = x
            bs1, bb1 = blk["bn1"]
            out = conv_bn(x, blk["conv1_w"], bs1, bb1,
                          stride=blk["stride"], pad=1, relu=True)
            if "ds_w" in blk:
                ds_s, ds_b = blk["ds_bn"]
                identity = conv_bn(x, blk["ds_w"], ds_s, ds_b,
                                   stride=blk["stride"], pad=0, relu=False)
            bs2, bb2 = blk["bn2"]
            # conv2 + bn2 + residual add + relu, fused in one kernel
            x = conv_bn(out, blk["conv2_w"], bs2, bb2,
                        stride=1, pad=1, relu=True, residual=identity)

    logits = avgpool_fc(x, params["fc_w"], params["fc_b"])                 # avgpool+flatten+fc
    return logits


if __name__ == "__main__":
    key = jax.random.PRNGKey(0)
    pkey, xkey = jax.random.split(key)

    layers = [1, 1, 1]
    n_classes = 10
    width = 2
    params = init_wideresnet_params(pkey, layers, n_classes, width=width,
                                    n_input_channels=3)

    x = jax.random.normal(xkey, (2, 3, 16, 16), jnp.float32)   # NCHW like PyTorch
    logits = wideresnet_forward(params, x)
    jax.block_until_ready(logits)
    assert logits.shape == (2, n_classes)
    assert bool(jnp.all(jnp.isfinite(logits)))
    print("KERNEL_OK")
</pallas_src>

<mosaic_0001>
module attributes {stable_mosaic.version = 11 : i64} {
  func.func @kernel(%arg0: i32, %arg1: i32, %arg2: i32, %arg3: memref<256x32xbf16, #tpu.memory_space<vmem>>, %arg4: memref<32x128xbf16, #tpu.memory_space<vmem>>, %arg5: memref<2x128xf32, #tpu.memory_space<vmem>>, %arg6: memref<256x128xbf16, #tpu.memory_space<vmem>>, %arg7: memref<256x128xf32, #tpu.memory_space<vmem>>) attributes {dimension_semantics = [#tpu.dimension_semantics<parallel>, #tpu.dimension_semantics<parallel>, #tpu.dimension_semantics<arbitrary>], iteration_bounds = array<i64: 2, 1, 1>, scalar_prefetch = 0 : i64, scratch_operands = 1 : i64, tpu.core_type = #tpu.core_type<tc>, window_params = [{transform_indices = @transform_0, window_bounds = array<i64: 256, 32>}, {transform_indices = @transform_1, window_bounds = array<i64: 32, 128>}, {transform_indices = @transform_2, window_bounds = array<i64: 2, 128>}, {transform_indices = @transform_3, window_bounds = array<i64: 256, 128>}]} {
    %c0_i32 = arith.constant 0 : i32
    %0 = arith.cmpi eq, %arg2, %c0_i32 : i32
    %1 = arith.extui %0 : i1 to i32
    %c0_i32_0 = arith.constant 0 : i32
    %2 = arith.cmpi ne, %1, %c0_i32_0 : i32
    scf.if %2 {
      %cst_10 = arith.constant 0.000000e+00 : f32
      %12 = vector.broadcast %cst_10 : f32 to vector<256x128xf32>
      %c0_11 = arith.constant 0 : index
      %c0_12 = arith.constant 0 : index
      %13 = vector.load %arg7[%c0_11, %c0_12] : memref<256x128xf32, #tpu.memory_space<vmem>>, vector<256x128xf32>
      tpu.vector_store %arg7[%c0_11, %c0_12], %12 {strides = array<i32>} : memref<256x128xf32, #tpu.memory_space<vmem>>, vector<256x128xf32>,
    } else {
    }
    %c0 = arith.constant 0 : index
    %c0_1 = arith.constant 0 : index
    %3 = vector.load %arg7[%c0, %c0_1] : memref<256x128xf32, #tpu.memory_space<vmem>>, vector<256x128xf32>
    %c0_2 = arith.constant 0 : index
    %c0_3 = arith.constant 0 : index
    %4 = vector.load %arg3[%c0_2, %c0_3] : memref<256x32xbf16, #tpu.memory_space<vmem>>, vector<256x32xbf16>
    %c0_4 = arith.constant 0 : index
    %c0_5 = arith.constant 0 : index
    %5 = vector.load %arg4[%c0_4, %c0_5] : memref<32x128xbf16, #tpu.memory_space<vmem>>, vector<32x128xbf16>
    %cst = arith.constant dense<0.000000e+00> : vector<256x128xf32>
    %6 = tpu.matmul %4, %5, %cst {dimension_numbers = #tpu.dot_dimension_numbers<[1], [0], [0], [1], [0, 0, 1, 1], [], []>} : vector<256x32xbf16>, vector<32x128xbf16>, vector<256x128xf32> -> vector<256x128xf32>
    %7 = arith.addf %3, %6 : vector<256x128xf32>
    %c0_6 = arith.constant 0 : index
    %c0_7 = arith.constant 0 : index
    %8 = vector.load %arg7[%c0_6, %c0_7] : memref<256x128xf32, #tpu.memory_space<vmem>>, vector<256x128xf32>
    tpu.vector_store %arg7[%c0_6, %c0_7], %7 {strides = array<i32>} : memref<256x128xf32, #tpu.memory_space<vmem>>, vector<256x128xf32>,
    %c0_i32_8 = arith.constant 0 : i32
    %9 = arith.cmpi eq, %arg2, %c0_i32_8 : i32
    %10 = arith.extui %9 : i1 to i32
    %c0_i32_9 = arith.constant 0 : i32
    %11 = arith.cmpi ne, %10, %c0_i32_9 : i32
    scf.if %11 {
      %c0_10 = arith.constant 0 : index
      %c0_11 = arith.constant 0 : index
      %12 = vector.load %arg5[%c0_10, %c0_11] : memref<2x128xf32, #tpu.memory_space<vmem>>, vector<2x128xf32>
      %c0_12 = arith.constant 0 : index
      %c0_13 = arith.constant 0 : index
      %13 = vector.load %arg7[%c0_12, %c0_13] : memref<256x128xf32, #tpu.memory_space<vmem>>, vector<256x128xf32>
      %14 = vector.extract_strided_slice %12 {offsets = [0, 0], sizes = [1, 128], strides = [1, 1]} : vector<2x128xf32> to vector<1x128xf32>
      %15 = vector.broadcast %14 : vector<1x128xf32> to vector<256x128xf32>
      %16 = arith.mulf %13, %15 : vector<256x128xf32>
      %17 = vector.extract_strided_slice %12 {offsets = [1, 0], sizes = [1, 128], strides = [1, 1]} : vector<2x128xf32> to vector<1x128xf32>
      %18 = vector.broadcast %17 : vector<1x128xf32> to vector<256x128xf32>
      %19 = arith.addf %16, %18 : vector<256x128xf32>
      %cst_14 = arith.constant 0.000000e+00 : f32
      %20 = vector.broadcast %cst_14 : f32 to vector<256x128xf32>
      %21 = arith.maximumf %19, %20 : vector<256x128xf32>
      %22 = arith.truncf %21 : vector<256x128xf32> to vector<256x128xbf16>
      %c0_15 = arith.constant 0 : index
      %c0_16 = arith.constant 0 : index
      %23 = vector.load %arg6[%c0_15, %c0_16] : memref<256x128xbf16, #tpu.memory_space<vmem>>, vector<256x128xbf16>
      tpu.vector_store %arg6[%c0_15, %c0_16], %22 {strides = array<i32>} : memref<256x128xbf16, #tpu.memory_space<vmem>>, vector<256x128xbf16>,
    } else {
    }
    return
  }
  func.func @transform_0(%arg0: i32, %arg1: i32, %arg2: i32) -> (i32, i32) {
    %c0_i32 = arith.constant 0 : i32
    return %arg0, %arg2 : i32, i32
  }
  func.func @transform_1(%arg0: i32, %arg1: i32, %arg2: i32) -> (i32, i32) {
    %c0_i32 = arith.constant 0 : i32
    return %arg2, %arg1 : i32, i32
  }
  func.func @transform_2(%arg0: i32, %arg1: i32, %arg2: i32) -> (i32, i32) {
    %c0_i32 = arith.constant 0 : i32
    %c0_i32_0 = arith.constant 0 : i32
    return %c0_i32, %arg1 : i32, i32
  }
  func.func @transform_3(%arg0: i32, %arg1: i32, %arg2: i32) -> (i32, i32) {
    %c0_i32 = arith.constant 0 : i32
    return %arg0, %arg1 : i32, i32
  }
}

</mosaic_0001>

<llo_original>
// kernel: tpu_custom_call.1
$region0: #{tpu_custom_call.1}
  #allocation0 [shape = 'u32[]', space=smem, size = 0x4, offset = 0x4, fixed_abs, tag = 'smem constant byte address 0x4 - core index']
  #allocation1 [shape = 'u32[144,128]{1,0:T(1,128)}', space=vmem, size = 0x12000, scoped, tag = 'internal scratch']
  #allocation2 [shape = 'f32[256,128]{1,0:T(8,128)}', space=vmem, size = 0x20000, scoped, tag = 'scratch operand']
  %s0 = inlined_call_operand.vmem [shape: bf16[512,32], index: 0, kind: input, shape index: {}]
  %s1 = inlined_call_operand.vmem [shape: bf16[32,128], index: 1, kind: input, shape index: {}]
  %s2 = inlined_call_operand.vmem [shape: f32[2,128], index: 2, kind: input, shape index: {}]
  %s3 = inlined_call_operand.hbm [shape: bf16[512,128], index: 3, kind: output, shape index: {}]
  %s4 = sld [smem:[#allocation0]]
  $region53: #{tpu_custom_call.1} parent=0
    _
  %s6 = ssub.s32 1, %s4
  %s7 = scalar_select 0, %s6, %s4
  $region1: #{tpu_custom_call.1} parent=0
    #allocation3 [shape = 'u8[131072]{0}', space=vmem, size = 0x20000, scoped, tag = 'output window, operand 0']
    #allocation4 [shape = 's32[2]{0}', space=sflag, size = 0x8, scoped, tag = 'scoped memory for tpu_custom_call.1']
    %8 = vsyncpa [#allocation4], 0
    %s9 = scalar_lea.sflag [#allocation4], 1
    %10 = vsyncpa %s9, 0
    loop: start=0, step=1, limit=4
    $region2: #{tpu_custom_call.1} parent=1 // loop_pre_header
      _
    $region3: #{tpu_custom_call.1} parent=1 // loop_header
      %s12 = sphi 0, %s16
      %p13 = scmp.ge.s32.totalorder %s12, 4
      %s19 = sphi 0, %s38
      %s20 = sphi 0, %s34
      %s21 = sphi 0, %s30
      %s22 = sphi 0, %s19
      %s23 = sphi 0, %s20
      %s24 = sphi 0, %s21
      %s25 = sphi 0, %s22
      %s26 = sphi 0, %s23
      %s27 = sphi 0, %s24
      %s43 = sphi 0, %s45
      %s46 = sphi 0, %s43
      %s47 = sphi 0, %s46
      %s63 = sphi 0, %s47
      %s71 = sphi 0, %s73
      %s74 = sphi 0, %s71
      %s75 = sphi 0, %s74
      %s91 = sphi 0, %s75
      %s97 = sphi 0, %s99
      %s100 = sphi 0, %s97
      %s101 = sphi 0, %s100
      %s117 = sphi 0, %s101
      %s125 = sphi 0, %s127
      %s128 = sphi 0, %s125
      %s129 = sphi 0, %s128
      %s145 = sphi 0, %s129
    $region4: #{tpu_custom_call.1} parent=1 // loop_header_branch
      %15 = sbr.rel (%p13) target = $region8
    $region5: #{tpu_custom_call.1} parent=1 // loop_body
      %s17 = ssub.s32 %s12, 1
      %s18 = ssub.s32 %s12, 2
      %s28 = sadd.s32 1, %s21
      %p29 = scmp.ge.s32.totalorder %s28, 1
      %s30 = scalar_select %p29, 0, %s28
      %s31 = sadd.s32 1, %s20
      %s32 = scalar_select %p29, %s31, %s20
      %p33 = scmp.ge.s32.totalorder %s32, 1
      %s34 = scalar_select %p33, 0, %s32
      %s35 = sadd.s32 1, %s19
      %s36 = scalar_select %p33, %s35, %s19
      %p37 = scmp.ge.s32.totalorder %s36, 2
      %s38 = scalar_select %p37, 0, %s36
      %s39 = ssub.s32 %s19, %s38
      %s40 = ssub.s32 %s21, %s30
      %s41 = sor.u32 %s39, %s40
      %p42 = scmp.eq.s32.totalorder %s41, 0
      %s44 = sadd.s32 %s43, 1
      %s45 = scalar_select %p42, %s43, %s44
      %p48 = pneg %p42
      %p49 = scmp.eq.s32.totalorder %s12, 1
      %p50 = por %p48, %p49
      %p51 = scmp.ne.s32.totalorder %s43, %s46
      %p52 = scmp.eq.s32.totalorder %s12, 0
      %p53 = por %p51, %p52
      %p54 = scmp.ne.s32.totalorder %s43, %s46
      %p55 = scmp.eq.s32.totalorder %s17, 1
      %p56 = por %p54, %p55
      %p57 = scmp.ne.s32.totalorder %s46, %s47
      %p58 = scmp.eq.s32.totalorder %s17, 0
      %p59 = por %p57, %p58
      %p60 = scmp.ne.s32.totalorder %s46, %s47
      %p61 = scmp.eq.s32.totalorder %s18, 1
      %p62 = por %p60, %p61
      %p64 = scmp.ne.s32.totalorder %s47, %s63
      %p65 = scmp.eq.s32.totalorder %s18, 0
      %p66 = por %p64, %p65
      %s67 = ssub.s32 %s21, %s30
      %s68 = ssub.s32 %s20, %s34
      %s69 = sor.u32 %s67, %s68
      %p70 = scmp.eq.s32.totalorder %s69, 0
      %s72 = sadd.s32 %s71, 1
      %s73 = scalar_select %p70, %s71, %s72
      %p76 = pneg %p70
      %p77 = scmp.eq.s32.totalorder %s12, 1
      %p78 = por %p76, %p77
      %p79 = scmp.ne.s32.totalorder %s71, %s74
      %p80 = scmp.eq.s32.totalorder %s12, 0
      %p81 = por %p79, %p80
      %p82 = scmp.ne.s32.totalorder %s71, %s74
      %p83 = scmp.eq.s32.totalorder %s17, 1
      %p84 = por %p82, %p83
      %p85 = scmp.ne.s32.totalorder %s74, %s75
      %p86 = scmp.eq.s32.totalorder %s17, 0
      %p87 = por %p85, %p86
      %p88 = scmp.ne.s32.totalorder %s74, %s75
      %p89 = scmp.eq.s32.totalorder %s18, 1
      %p90 = por %p88, %p89
      %p92 = scmp.ne.s32.totalorder %s75, %s91
      %p93 = scmp.eq.s32.totalorder %s18, 0
      %p94 = por %p92, %p93
      %s95 = ssub.s32 %s20, %s34
      %p96 = scmp.eq.s32.totalorder %s95, 0
      %s98 = sadd.s32 %s97, 1
      %s99 = scalar_select %p96, %s97, %s98
      %p102 = pneg %p96
      %p103 = scmp.eq.s32.totalorder %s12, 1
      %p104 = por %p102, %p103
      %p105 = scmp.ne.s32.totalorder %s97, %s100
      %p106 = scmp.eq.s32.totalorder %s12, 0
      %p107 = por %p105, %p106
      %p108 = scmp.ne.s32.totalorder %s97, %s100
      %p109 = scmp.eq.s32.totalorder %s17, 1
      %p110 = por %p108, %p109
      %p111 = scmp.ne.s32.totalorder %s100, %s101
      %p112 = scmp.eq.s32.totalorder %s17, 0
      %p113 = por %p111, %p112
      %p114 = scmp.ne.s32.totalorder %s100, %s101
      %p115 = scmp.eq.s32.totalorder %s18, 1
      %p116 = por %p114, %p115
      %p118 = scmp.ne.s32.totalorder %s101, %s117
      %p119 = scmp.eq.s32.totalorder %s18, 0
      %p120 = por %p118, %p119
      %s121 = ssub.s32 %s19, %s38
      %s122 = ssub.s32 %s20, %s34
      %s123 = sor.u32 %s121, %s122
      %p124 = scmp.eq.s32.totalorder %s123, 0
      %s126 = sadd.s32 %s125, 1
      %s127 = scalar_select %p124, %s125, %s126
      %p130 = pneg %p124
      %p131 = scmp.eq.s32.totalorder %s12, 1
      %p132 = por %p130, %p131
      %p133 = scmp.ne.s32.totalorder %s125, %s128
      %p134 = scmp.eq.s32.totalorder %s12, 0
      %p135 = por %p133, %p134
      %p136 = scmp.ne.s32.totalorder %s125, %s128
      %p137 = scmp.eq.s32.totalorder %s17, 1
      %p138 = por %p136, %p137
      %p139 = scmp.ne.s32.totalorder %s128, %s129
      %p140 = scmp.eq.s32.totalorder %s17, 0
      %p141 = por %p139, %p140
      %p142 = scmp.ne.s32.totalorder %s128, %s129
      %p143 = scmp.eq.s32.totalorder %s18, 1
      %p144 = por %p142, %p143
      %p146 = scmp.ne.s32.totalorder %s129, %s145
      %p147 = scmp.eq.s32.totalorder %s18, 0
      %p148 = por %p146, %p147
      %p149 = scmp.le.s32.totalorder 1, %s12
      %p150 = scmp.lt.s32.totalorder %s12, 3
      %p151 = pnand %p149, %p150
      %p152 = pneg %p151
      // Predicated region
      $region9: #{tpu_custom_call.1} parent=5 // pred_check
        _
      $region10: #{tpu_custom_call.1} parent=5 // pred_check_branch
        %154 = sbr.rel (%p151) target = $region12
      $region11: #{tpu_custom_call.1} parent=5 // pred_region
        %s155 = ssub.s32 %s12, 1
        // Predicated region
        $region13: #{tpu_custom_call.1} parent=11 // pred_check
          %p156 = pneg %p87
        $region14: #{tpu_custom_call.1} parent=11 // pred_check_branch
          %158 = sbr.rel (%p156) target = $region16
        $region15: #{tpu_custom_call.1} parent=11 // pred_region
          %s159 = smul.u32 4, %s24
          %p160 = scmp.lt.s32.totalorder %s159, 3
          %s161 = scalar_select %p160, %s159, 3
          %p162 = scmp.lt.s32.totalorder %s23, 0
          %s163 = scalar_select %p162, %s23, 0
          %s164 = sadd.s32 %s163, %s161
          %s165 = smul.addr %s164, 4
          %s166 = scalar_lea.vmem %s1, %s165
          %s167 = smul.u32 4, %s24
        $region16: #{tpu_custom_call.1} parent=11 // pred_fallthru
          _
        // Predicated region
        $region17: #{tpu_custom_call.1} parent=11 // pred_check
          %p168 = pneg %p113
        $region18: #{tpu_custom_call.1} parent=11 // pred_check_branch
          %170 = sbr.rel (%p168) target = $region20
        $region19: #{tpu_custom_call.1} parent=11 // pred_region
          %p171 = scmp.lt.s32.totalorder %s23, 0
          %s172 = scalar_select %p171, %s23, 0
          %s173 = smul.addr %s172, 2
          %s174 = scalar_lea.vmem %s2, %s173
        $region20: #{tpu_custom_call.1} parent=11 // pred_fallthru
          _
      $region12: #{tpu_custom_call.1} parent=5 // pred_fallthru
        _
      %p175 = scmp.lt.s32.totalorder %s12, 2
      // Predicated region
      $region21: #{tpu_custom_call.1} parent=5 // pred_check
        %p176 = pneg %p175
      $region22: #{tpu_custom_call.1} parent=5 // pred_check_branch
        %178 = sbr.rel (%p176) target = $region24
      $region23: #{tpu_custom_call.1} parent=5 // pred_region
        // Predicated region
        $region25: #{tpu_custom_call.1} parent=23 // pred_check
          %p179 = pneg %p53
        $region26: #{tpu_custom_call.1} parent=23 // pred_check_branch
          %181 = sbr.rel (%p179) target = $region28
        $region27: #{tpu_custom_call.1} parent=23 // pred_region
          %s182 = smul.u32 32, %s19
          %p183 = scmp.lt.s32.totalorder %s182, 63
          %s184 = scalar_select %p183, %s182, 63
          %p185 = scmp.lt.s32.totalorder %s21, 0
          %s186 = scalar_select %p185, %s21, 0
          %s187 = sadd.s32 %s186, %s184
          %s188 = smul.addr %s187, 4
          %s189 = scalar_lea.vmem %s0, %s188
          %s190 = smul.u32 32, %s19
        $region28: #{tpu_custom_call.1} parent=23 // pred_fallthru
          _
      $region24: #{tpu_custom_call.1} parent=5 // pred_fallthru
        _
      %p191 = scmp.le.s32.totalorder 1, %s12
      %p192 = scmp.lt.s32.totalorder %s12, 3
      %p193 = pnand %p191, %p192
      %p194 = pneg %p193
      // Predicated region
      $region29: #{tpu_custom_call.1} parent=5 // pred_check
        _
      $region30: #{tpu_custom_call.1} parent=5 // pred_check_branch
        %196 = sbr.rel (%p193) target = $region32
      $region31: #{tpu_custom_call.1} parent=5 // pred_region
        %s197 = ssub.s32 %s12, 1
        %s198 = smul.u32 32, %s22
        %p199 = scmp.lt.s32.totalorder %s198, 63
        %s200 = scalar_select %p199, %s198, 63
        %p201 = scmp.lt.s32.totalorder %s24, 0
        %s202 = scalar_select %p201, %s24, 0
        %s203 = sadd.s32 %s202, %s200
        %s204 = smul.addr %s203, 4
        %s205 = scalar_lea.vmem %s0, %s204
        %p206 = pneg %p59
        %p207 = pneg %p56
        %s208 = smul.u32 4, %s24
        %p209 = scmp.lt.s32.totalorder %s208, 3
        %s210 = scalar_select %p209, %s208, 3
        %p211 = scmp.lt.s32.totalorder %s23, 0
        %s212 = scalar_select %p211, %s23, 0
        %s213 = sadd.s32 %s212, %s210
        %s214 = smul.addr %s213, 4
        %s215 = scalar_lea.vmem %s1, %s214
        %p216 = pneg %p87
        %p217 = pneg %p84
        %p218 = scmp.lt.s32.totalorder %s23, 0
        %s219 = scalar_select %p218, %s23, 0
        %s220 = smul.addr %s219, 2
        %s221 = scalar_lea.vmem %s2, %s220
        %p222 = pneg %p113
        %p223 = pneg %p110
        %p224 = pneg %p141
        %p225 = pneg %p138
        %s226 = sand.u32 %s128, 1
        %s227 = scalar_lea.sflag [#allocation4], %s226
        %s228 = sand.u32 %s128, 1
        %s229 = smul.addr %s228, 128
        %s230 = scalar_lea.vmem [#allocation3], %s229
        %s231 = smul.u32 32, %s22
        %p232 = scmp.lt.s32.totalorder %s231, 63
        %s233 = scalar_select %p232, %s231, 63
        %p234 = scmp.lt.s32.totalorder %s24, 0
        %s235 = scalar_select %p234, %s24, 0
        %s236 = sadd.s32 %s235, %s233
        %s237 = smul.addr %s236, 4
        %s238 = scalar_lea.vmem %s0, %s237
        %s239 = smul.u32 32, %s22
        %s240 = smul.u32 4, %s24
        %p241 = scmp.lt.s32.totalorder %s240, 3
        %s242 = scalar_select %p241, %s240, 3
        %p243 = scmp.lt.s32.totalorder %s23, 0
        %s244 = scalar_select %p243, %s23, 0
        %s245 = sadd.s32 %s244, %s242
        %s246 = smul.addr %s245, 4
        %s247 = scalar_lea.vmem %s1, %s246
        %s248 = smul.u32 4, %s24
        %p249 = scmp.lt.s32.totalorder %s23, 0
        %s250 = scalar_select %p249, %s23, 0
        %s251 = smul.addr %s250, 2
        %s252 = scalar_lea.vmem %s2, %s251
        %s253 = smul.u32 32, %s22
        %p255 = scmp.eq.s32.totalorder %s24, 0
        // Predicated region
        $region33: #{tpu_custom_call.1} parent=31 // pred_check
          %p256 = pneg %p255
        $region34: #{tpu_custom_call.1} parent=31 // pred_check_branch
          %258 = sbr.rel (%p256) target = $region36
        $region35: #{tpu_custom_call.1} parent=31 // pred_region
          %259 = vst [vmem:[#allocation2] sm:$0xff] 0.0
          %260 = vst [vmem:[#allocation2 + $0x8] sm:$0xff] 0.0
          %261 = vst [vmem:[#allocation2 + $0x10] sm:$0xff] 0.0
          %262 = vst [vmem:[#allocation2 + $0x18] sm:$0xff] 0.0
          %263 = vst [vmem:[#allocation2 + $0x20] sm:$0xff] 0.0
          %264 = vst [vmem:[#allocation2 + $0x28] sm:$0xff] 0.0
          %265 = vst [vmem:[#allocation2 + $0x30] sm:$0xff] 0.0
          %266 = vst [vmem:[#allocation2 + $0x38] sm:$0xff] 0.0
          %267 = vst [vmem:[#allocation2 + $0x40] sm:$0xff] 0.0
          %268 = vst [vmem:[#allocation2 + $0x48] sm:$0xff] 0.0
          %269 = vst [vmem:[#allocation2 + $0x50] sm:$0xff] 0.0
          %270 = vst [vmem:[#allocation2 + $0x58] sm:$0xff] 0.0
          %271 = vst [vmem:[#allocation2 + $0x60] sm:$0xff] 0.0
          %272 = vst [vmem:[#allocation2 + $0x68] sm:$0xff] 0.0
          %273 = vst [vmem:[#allocation2 + $0x70] sm:$0xff] 0.0
          %274 = vst [vmem:[#allocation2 + $0x78] sm:$0xff] 0.0
          %275 = vst [vmem:[#allocation2 + $0x80] sm:$0xff] 0.0
          %276 = vst [vmem:[#allocation2 + $0x88] sm:$0xff] 0.0
          %277 = vst [vmem:[#allocation2 + $0x90] sm:$0xff] 0.0
          %278 = vst [vmem:[#allocation2 + $0x98] sm:$0xff] 0.0
          %279 = vst [vmem:[#allocation2 + $0xa0] sm:$0xff] 0.0
          %280 = vst [vmem:[#allocation2 + $0xa8] sm:$0xff] 0.0
          %281 = vst [vmem:[#allocation2 + $0xb0] sm:$0xff] 0.0
          %282 = vst [vmem:[#allocation2 + $0xb8] sm:$0xff] 0.0
          %283 = vst [vmem:[#allocation2 + $0xc0] sm:$0xff] 0.0
          %284 = vst [vmem:[#allocation2 + $0xc8] sm:$0xff] 0.0
          %285 = vst [vmem:[#allocation2 + $0xd0] sm:$0xff] 0.0
          %286 = vst [vmem:[#allocation2 + $0xd8] sm:$0xff] 0.0
          %287 = vst [vmem:[#allocation2 + $0xe0] sm:$0xff] 0.0
          %288 = vst [vmem:[#allocation2 + $0xe8] sm:$0xff] 0.0
          %289 = vst [vmem:[#allocation2 + $0xf0] sm:$0xff] 0.0
          %290 = vst [vmem:[#allocation2 + $0xf8] sm:$0xff] 0.0
        $region36: #{tpu_custom_call.1} parent=31 // pred_fallthru
          _
        %v291 = vld [vmem:[#allocation2] sm:$0xff]
        %v292 = vld [vmem:[#allocation2 + $0x8] sm:$0xff]
        %v293 = vld [vmem:[#allocation2 + $0x10] sm:$0xff]
        %v294 = vld [vmem:[#allocation2 + $0x18] sm:$0xff]
        %v295 = vld [vmem:[#allocation2 + $0x20] sm:$0xff]
        %v296 = vld [vmem:[#allocation2 + $0x28] sm:$0xff]
        %v297 = vld [vmem:[#allocation2 + $0x30] sm:$0xff]
        %v298 = vld [vmem:[#allocation2 + $0x38] sm:$0xff]
        %v299 = vld [vmem:[#allocation2 + $0x40] sm:$0xff]
        %v300 = vld [vmem:[#allocation2 + $0x48] sm:$0xff]
        %v301 = vld [vmem:[#allocation2 + $0x50] sm:$0xff]
        %v302 = vld [vmem:[#allocation2 + $0x58] sm:$0xff]
        %v303 = vld [vmem:[#allocation2 + $0x60] sm:$0xff]
        %v304 = vld [vmem:[#allocation2 + $0x68] sm:$0xff]
        %v305 = vld [vmem:[#allocation2 + $0x70] sm:$0xff]
        %v306 = vld [vmem:[#allocation2 + $0x78] sm:$0xff]
        %v307 = vld [vmem:[#allocation2 + $0x80] sm:$0xff]
        %v308 = vld [vmem:[#allocation2 + $0x88] sm:$0xff]
        %v309 = vld [vmem:[#allocation2 + $0x90] sm:$0xff]
        %v310 = vld [vmem:[#allocation2 + $0x98] sm:$0xff]
        %v311 = vld [vmem:[#allocation2 + $0xa0] sm:$0xff]
        %v312 = vld [vmem:[#allocation2 + $0xa8] sm:$0xff]
        %v313 = vld [vmem:[#allocation2 + $0xb0] sm:$0xff]
        %v314 = vld [vmem:[#allocation2 + $0xb8] sm:$0xff]
        %v315 = vld [vmem:[#allocation2 + $0xc0] sm:$0xff]
        %v316 = vld [vmem:[#allocation2 + $0xc8] sm:$0xff]
        %v317 = vld [vmem:[#allocation2 + $0xd0] sm:$0xff]
        %v318 = vld [vmem:[#allocation2 + $0xd8] sm:$0xff]
        %v319 = vld [vmem:[#allocation2 + $0xe0] sm:$0xff]
        %v320 = vld [vmem:[#allocation2 + $0xe8] sm:$0xff]
        %v321 = vld [vmem:[#allocation2 + $0xf0] sm:$0xff]
        %v322 = vld [vmem:[#allocation2 + $0xf8] sm:$0xff]
        %v323 = vld [vmem:[%s238] sm:$0xf]
        %v324 = vld [vmem:[%s238 + $0x4] sm:$0xf]
        %v325 = vld [vmem:[%s238 + $0x8] sm:$0xf]
        %v326 = vld [vmem:[%s238 + $0xc] sm:$0xf]
        %v327 = vld [vmem:[%s238 + $0x10] sm:$0xf]
        %v328 = vld [vmem:[%s238 + $0x14] sm:$0xf]
        %v329 = vld [vmem:[%s238 + $0x18] sm:$0xf]
        %v330 = vld [vmem:[%s238 + $0x1c] sm:$0xf]
        %v331 = vld [vmem:[%s238 + $0x20] sm:$0xf]
        %v332 = vld [vmem:[%s238 + $0x24] sm:$0xf]
        %v333 = vld [vmem:[%s238 + $0x28] sm:$0xf]
        %v334 = vld [vmem:[%s238 + $0x2c] sm:$0xf]
        %v335 = vld [vmem:[%s238 + $0x30] sm:$0xf]
        %v336 = vld [vmem:[%s238 + $0x34] sm:$0xf]
        %v337 = vld [vmem:[%s238 + $0x38] sm:$0xf]
        %v338 = vld [vmem:[%s238 + $0x3c] sm:$0xf]
        %v339 = vld [vmem:[%s238 + $0x40] sm:$0xf]
        %v340 = vld [vmem:[%s238 + $0x44] sm:$0xf]
        %v341 = vld [vmem:[%s238 + $0x48] sm:$0xf]
        %v342 = vld [vmem:[%s238 + $0x4c] sm:$0xf]
        %v343 = vld [vmem:[%s238 + $0x50] sm:$0xf]
        %v344 = vld [vmem:[%s238 + $0x54] sm:$0xf]
        %v345 = vld [vmem:[%s238 + $0x58] sm:$0xf]
        %v346 = vld [vmem:[%s238 + $0x5c] sm:$0xf]
        %v347 = vld [vmem:[%s238 + $0x60] sm:$0xf]
        %v348 = vld [vmem:[%s238 + $0x64] sm:$0xf]
        %v349 = vld [vmem:[%s238 + $0x68] sm:$0xf]
        %v350 = vld [vmem:[%s238 + $0x6c] sm:$0xf]
        %v351 = vld [vmem:[%s238 + $0x70] sm:$0xf]
        %v352 = vld [vmem:[%s238 + $0x74] sm:$0xf]
        %v353 = vld [vmem:[%s238 + $0x78] sm:$0xf]
        %v354 = vld [vmem:[%s238 + $0x7c] sm:$0xf]
        %v355 = vld [vmem:[%s247] sm:$0xf]
        %v356 = vld [vmem:[%s247 + $0x4] sm:$0xf]
        %v357 = vld [vmem:[%s247 + $0x8] sm:$0xf]
        %v358 = vld [vmem:[%s247 + $0xc] sm:$0xf]
        %v391 = vunpack.c.l.b16 %v323
        %v392 = vunpack.c.l.b16 %v324
        %v393 = vunpack.c.l.b16 %v325
        %v394 = vunpack.c.l.b16 %v326
        %v395 = vunpack.c.l.b16 %v327
        %v396 = vunpack.c.l.b16 %v328
        %v397 = vunpack.c.l.b16 %v329
        %v398 = vunpack.c.l.b16 %v330
        %v399 = vunpack.c.l.b16 %v331
        %v400 = vunpack.c.l.b16 %v332
        %v401 = vunpack.c.l.b16 %v333
        %v402 = vunpack.c.l.b16 %v334
        %v403 = vunpack.c.l.b16 %v335
        %v404 = vunpack.c.l.b16 %v336
        %v405 = vunpack.c.l.b16 %v337
        %v406 = vunpack.c.l.b16 %v338
        %v407 = vunpack.c.l.b16 %v339
        %v408 = vunpack.c.l.b16 %v340
        %v409 = vunpack.c.l.b16 %v341
        %v410 = vunpack.c.l.b16 %v342
        %v411 = vunpack.c.l.b16 %v343
        %v412 = vunpack.c.l.b16 %v344
        %v413 = vunpack.c.l.b16 %v345
        %v414 = vunpack.c.l.b16 %v346
        %v415 = vunpack.c.l.b16 %v347
        %v416 = vunpack.c.l.b16 %v348
        %v417 = vunpack.c.l.b16 %v349
        %v418 = vunpack.c.l.b16 %v350
        %v419 = vunpack.c.l.b16 %v351
        %v420 = vunpack.c.l.b16 %v352
        %v421 = vunpack.c.l.b16 %v353
        %v422 = vunpack.c.l.b16 %v354
        %v423 = vpack.c.b16 %v392, %v391
        %v424 = vpack.c.b16 %v394, %v393
        %v425 = vpack.c.b16 %v396, %v395
        %v426 = vpack.c.b16 %v398, %v397
        %v427 = vpack.c.b16 %v400, %v399
        %v428 = vpack.c.b16 %v402, %v401
        %v429 = vpack.c.b16 %v404, %v403
        %v430 = vpack.c.b16 %v406, %v405
        %v431 = vpack.c.b16 %v408, %v407
        %v432 = vpack.c.b16 %v410, %v409
        %v433 = vpack.c.b16 %v412, %v411
        %v434 = vpack.c.b16 %v414, %v413
        %v435 = vpack.c.b16 %v416, %v415
        %v436 = vpack.c.b16 %v418, %v417
        %v437 = vpack.c.b16 %v420, %v419
        %v438 = vpack.c.b16 %v422, %v421
        %v443 = vunpack.c.l.b16 %v355
        %v444 = vunpack.c.l.b16 %v356
        %v445 = vunpack.c.l.b16 %v357
        %v446 = vunpack.c.l.b16 %v358
        %v447 = vpack.c.b16 %v444, %v443
        %v448 = vpack.c.b16 %v446, %v445
        %vm451 = vcmask 261120
        %v453 = vsel %vm451, %v423, 0
        %v456 = vsel %vm451, %v424, 0
        %v459 = vsel %vm451, %v425, 0
        %v462 = vsel %vm451, %v426, 0
        %v465 = vsel %vm451, %v427, 0
        %v468 = vsel %vm451, %v428, 0
        %v471 = vsel %vm451, %v429, 0
        %v474 = vsel %vm451, %v430, 0
        %v477 = vsel %vm451, %v431, 0
        %v480 = vsel %vm451, %v432, 0
        %v483 = vsel %vm451, %v433, 0
        %v486 = vsel %vm451, %v434, 0
        %v489 = vsel %vm451, %v435, 0
        %v492 = vsel %vm451, %v436, 0
        %v495 = vsel %vm451, %v437, 0
        %v498 = vsel %vm451, %v438, 0
        %500 = vmatprep.subr.bf16.mxu0 0
        %501 = vmatpush1.bf16.msra.mxu0 %v447
        %502 = vmatprep.subr.bf16.mxu0 0
        %503 = vmatpush1.bf16.msra.mxu0 %v448
        %504 = vmatprep.subr.bf16.mxu0 0
        %505 = vmatpush1.bf16.msra.mxu0 0
        %506 = vmatprep.subr.bf16.mxu0 0
        %507 = vmatpush1.bf16.msra.mxu0 0
        %508 = vmatprep.subr.bf16.mxu0 0
        %509 = vmatpush1.bf16.msra.mxu0 0
        %510 = vmatprep.subr.bf16.mxu0 0
        %511 = vmatpush1.bf16.msra.mxu0 0
        %512 = vmatprep.subr.bf16.mxu0 0
        %513 = vmatpush1.bf16.msra.mxu0 0
        %514 = vmatprep.subr.bf16.mxu0 0
        %515 = vmatpush1.bf16.msra.mxu0 0
        %516 = vmatprep.subr.bf16.mxu0 0
        %517 = vmatpush1.bf16.msra.mxu0 0
        %518 = vmatprep.subr.bf16.mxu0 0
        %519 = vmatpush1.bf16.msra.mxu0 0
        %520 = vmatprep.subr.bf16.mxu0 0
        %521 = vmatpush1.bf16.msra.mxu0 0
        %522 = vmatprep.subr.bf16.mxu0 0
        %523 = vmatpush1.bf16.msra.mxu0 0
        %524 = vmatprep.subr.bf16.mxu0 0
        %525 = vmatpush1.bf16.msra.mxu0 0
        %526 = vmatprep.subr.bf16.mxu0 0
        %527 = vmatpush1.bf16.msra.mxu0 0
        %528 = vmatprep.subr.bf16.mxu0 0
        %529 = vmatpush1.bf16.msra.mxu0 0
        %530 = vmatprep.subr.bf16.mxu0 0
        %531 = vmatpush1.bf16.msra.mxu0 0
        %532 = vmatprep.mubr.bf16.mxu0 0
        %533 = vmatmul.mubr.bf16.gmra.mrb[0].mxu0 %v453
        %v534 = vpop.f32.mrb[0].mxu0
        %v535 = vadd.f32 0.0, %v534
        %v536 = vpop.f32.mrb[0].mxu0
        %v537 = vpop.f32.mrb[0].mxu0
        %v538 = vadd.f32 0.0, %v537
        %v539 = vpop.f32.mrb[0].mxu0
        %540 = vmatprep.mubr.bf16.mxu0 0
        %541 = vmatmul.mubr.bf16.gmra.mrb[0].mxu0 %v456
        %v542 = vpop.f32.mrb[0].mxu0
        %v543 = vadd.f32 0.0, %v542
        %v544 = vpop.f32.mrb[0].mxu0
        %v545 = vpop.f32.mrb[0].mxu0
        %v546 = vadd.f32 0.0, %v545
        %v547 = vpop.f32.mrb[0].mxu0
        %548 = vmatprep.mubr.bf16.mxu0 0
        %549 = vmatmul.mubr.bf16.gmra.mrb[0].mxu0 %v459
        %v550 = vpop.f32.mrb[0].mxu0
        %v551 = vadd.f32 0.0, %v550
        %v552 = vpop.f32.mrb[0].mxu0
        %v553 = vpop.f32.mrb[0].mxu0
        %v554 = vadd.f32 0.0, %v553
        %v555 = vpop.f32.mrb[0].mxu0
        %556 = vmatprep.mubr.bf16.mxu0 0
        %557 = vmatmul.mubr.bf16.gmra.mrb[0].mxu0 %v462
        %v558 = vpop.f32.mrb[0].mxu0
        %v559 = vadd.f32 0.0, %v558
        %v560 = vpop.f32.mrb[0].mxu0
        %v561 = vpop.f32.mrb[0].mxu0
        %v562 = vadd.f32 0.0, %v561
        %v563 = vpop.f32.mrb[0].mxu0
        %564 = vmatprep.mubr.bf16.mxu0 0
        %565 = vmatmul.mubr.bf16.gmra.mrb[0].mxu0 %v465
        %v566 = vpop.f32.mrb[0].mxu0
        %v567 = vadd.f32 0.0, %v566
        %v568 = vpop.f32.mrb[0].mxu0
        %v569 = vpop.f32.mrb[0].mxu0
        %v570 = vadd.f32 0.0, %v569
        %v571 = vpop.f32.mrb[0].mxu0
        %572 = vmatprep.mubr.bf16.mxu0 0
        %573 = vmatmul.mubr.bf16.gmra.mrb[0].mxu0 %v468
        %v574 = vpop.f32.mrb[0].mxu0
        %v575 = vadd.f32 0.0, %v574
        %v576 = vpop.f32.mrb[0].mxu0
        %v577 = vpop.f32.mrb[0].mxu0
        %v578 = vadd.f32 0.0, %v577
        %v579 = vpop.f32.mrb[0].mxu0
        %580 = vmatprep.mubr.bf16.mxu0 0
        %581 = vmatmul.mubr.bf16.gmra.mrb[0].mxu0 %v471
        %v582 = vpop.f32.mrb[0].mxu0
        %v583 = vadd.f32 0.0, %v582
        %v584 = vpop.f32.mrb[0].mxu0
        %v585 = vpop.f32.mrb[0].mxu0
        %v586 = vadd.f32 0.0, %v585
        %v587 = vpop.f32.mrb[0].mxu0
        %588 = vmatprep.mubr.bf16.mxu0 0
        %589 = vmatmul.mubr.bf16.gmra.mrb[0].mxu0 %v474
        %v590 = vpop.f32.mrb[0].mxu0
        %v591 = vadd.f32 0.0, %v590
        %v592 = vpop.f32.mrb[0].mxu0
        %v593 = vpop.f32.mrb[0].mxu0
        %v594 = vadd.f32 0.0, %v593
        %v595 = vpop.f32.mrb[0].mxu0
        %596 = vmatprep.mubr.bf16.mxu0 0
        %597 = vmatmul.mubr.bf16.gmra.mrb[0].mxu0 %v477
        %v598 = vpop.f32.mrb[0].mxu0
        %v599 = vadd.f32 0.0, %v598
        %v600 = vpop.f32.mrb[0].mxu0
        %v601 = vpop.f32.mrb[0].mxu0
        %v602 = vadd.f32 0.0, %v601
        %v603 = vpop.f32.mrb[0].mxu0
        %604 = vmatprep.mubr.bf16.mxu0 0
        %605 = vmatmul.mubr.bf16.gmra.mrb[0].mxu0 %v480
        %v606 = vpop.f32.mrb[0].mxu0
        %v607 = vadd.f32 0.0, %v606
        %v608 = vpop.f32.mrb[0].mxu0
        %v609 = vpop.f32.mrb[0].mxu0
        %v610 = vadd.f32 0.0, %v609
        %v611 = vpop.f32.mrb[0].mxu0
        %612 = vmatprep.mubr.bf16.mxu0 0
        %613 = vmatmul.mubr.bf16.gmra.mrb[0].mxu0 %v483
        %v614 = vpop.f32.mrb[0].mxu0
        %v615 = vadd.f32 0.0, %v614
        %v616 = vpop.f32.mrb[0].mxu0
        %v617 = vpop.f32.mrb[0].mxu0
        %v618 = vadd.f32 0.0, %v617
        %v619 = vpop.f32.mrb[0].mxu0
        %620 = vmatprep.mubr.bf16.mxu0 0
        %621 = vmatmul.mubr.bf16.gmra.mrb[0].mxu0 %v486
        %v622 = vpop.f32.mrb[0].mxu0
        %v623 = vadd.f32 0.0, %v622
        %v624 = vpop.f32.mrb[0].mxu0
        %v625 = vpop.f32.mrb[0].mxu0
        %v626 = vadd.f32 0.0, %v625
        %v627 = vpop.f32.mrb[0].mxu0
        %628 = vmatprep.mubr.bf16.mxu0 0
        %629 = vmatmul.mubr.bf16.gmra.mrb[0].mxu0 %v489
        %v630 = vpop.f32.mrb[0].mxu0
        %v631 = vadd.f32 0.0, %v630
        %v632 = vpop.f32.mrb[0].mxu0
        %v633 = vpop.f32.mrb[0].mxu0
        %v634 = vadd.f32 0.0, %v633
        %v635 = vpop.f32.mrb[0].mxu0
        %636 = vmatprep.mubr.bf16.mxu0 0
        %637 = vmatmul.mubr.bf16.gmra.mrb[0].mxu0 %v492
        %v638 = vpop.f32.mrb[0].mxu0
        %v639 = vadd.f32 0.0, %v638
        %v640 = vpop.f32.mrb[0].mxu0
        %v641 = vpop.f32.mrb[0].mxu0
        %v642 = vadd.f32 0.0, %v641
        %v643 = vpop.f32.mrb[0].mxu0
        %644 = vmatprep.mubr.bf16.mxu0 0
        %645 = vmatmul.mubr.bf16.gmra.mrb[0].mxu0 %v495
        %v646 = vpop.f32.mrb[0].mxu0
        %v647 = vadd.f32 0.0, %v646
        %v648 = vpop.f32.mrb[0].mxu0
        %v649 = vpop.f32.mrb[0].mxu0
        %v650 = vadd.f32 0.0, %v649
        %v651 = vpop.f32.mrb[0].mxu0
        %652 = vmatprep.mubr.bf16.mxu0 0
        %653 = vmatmul.mubr.bf16.gmra.mrb[0].mxu0 %v498
        %v654 = vpop.f32.mrb[0].mxu0
        %v655 = vadd.f32 0.0, %v654
        %v656 = vpop.f32.mrb[0].mxu0
        %v657 = vpop.f32.mrb[0].mxu0
        %v658 = vadd.f32 0.0, %v657
        %v659 = vpop.f32.mrb[0].mxu0
        %660 = vdwg.mxu0
        %v661 = vadd.f32 %v291, %v535
        %v662 = vadd.f32 %v292, %v538
        %v663 = vadd.f32 %v293, %v543
        %v664 = vadd.f32 %v294, %v546
        %v665 = vadd.f32 %v295, %v551
        %v666 = vadd.f32 %v296, %v554
        %v667 = vadd.f32 %v297, %v559
        %v668 = vadd.f32 %v298, %v562
        %v669 = vadd.f32 %v299, %v567
        %v670 = vadd.f32 %v300, %v570
        %v671 = vadd.f32 %v301, %v575
        %v672 = vadd.f32 %v302, %v578
        %v673 = vadd.f32 %v303, %v583
        %v674 = vadd.f32 %v304, %v586
        %v675 = vadd.f32 %v305, %v591
        %v676 = vadd.f32 %v306, %v594
        %v677 = vadd.f32 %v307, %v599
        %v678 = vadd.f32 %v308, %v602
        %v679 = vadd.f32 %v309, %v607
        %v680 = vadd.f32 %v310, %v610
        %v681 = vadd.f32 %v311, %v615
        %v682 = vadd.f32 %v312, %v618
        %v683 = vadd.f32 %v313, %v623
        %v684 = vadd.f32 %v314, %v626
        %v685 = vadd.f32 %v315, %v631
        %v686 = vadd.f32 %v316, %v634
        %v687 = vadd.f32 %v317, %v639
        %v688 = vadd.f32 %v318, %v642
        %v689 = vadd.f32 %v319, %v647
        %v690 = vadd.f32 %v320, %v650
        %v691 = vadd.f32 %v321, %v655
        %v692 = vadd.f32 %v322, %v658
        %693 = vst [vmem:[#allocation2] sm:$0xff] %v661
        %694 = vst [vmem:[#allocation2 + $0x8] sm:$0xff] %v662
        %695 = vst [vmem:[#allocation2 + $0x10] sm:$0xff] %v663
        %696 = vst [vmem:[#allocation2 + $0x18] sm:$0xff] %v664
        %697 = vst [vmem:[#allocation2 + $0x20] sm:$0xff] %v665
        %698 = vst [vmem:[#allocation2 + $0x28] sm:$0xff] %v666
        %699 = vst [vmem:[#allocation2 + $0x30] sm:$0xff] %v667
        %700 = vst [vmem:[#allocation2 + $0x38] sm:$0xff] %v668
        %701 = vst [vmem:[#allocation2 + $0x40] sm:$0xff] %v669
        %702 = vst [vmem:[#allocation2 + $0x48] sm:$0xff] %v670
        %703 = vst [vmem:[#allocation2 + $0x50] sm:$0xff] %v671
        %704 = vst [vmem:[#allocation2 + $0x58] sm:$0xff] %v672
        %705 = vst [vmem:[#allocation2 + $0x60] sm:$0xff] %v673
        %706 = vst [vmem:[#allocation2 + $0x68] sm:$0xff] %v674
        %707 = vst [vmem:[#allocation2 + $0x70] sm:$0xff] %v675
        %708 = vst [vmem:[#allocation2 + $0x78] sm:$0xff] %v676
        %709 = vst [vmem:[#allocation2 + $0x80] sm:$0xff] %v677
        %710 = vst [vmem:[#allocation2 + $0x88] sm:$0xff] %v678
        %711 = vst [vmem:[#allocation2 + $0x90] sm:$0xff] %v679
        %712 = vst [vmem:[#allocation2 + $0x98] sm:$0xff] %v680
        %713 = vst [vmem:[#allocation2 + $0xa0] sm:$0xff] %v681
        %714 = vst [vmem:[#allocation2 + $0xa8] sm:$0xff] %v682
        %715 = vst [vmem:[#allocation2 + $0xb0] sm:$0xff] %v683
        %716 = vst [vmem:[#allocation2 + $0xb8] sm:$0xff] %v684
        %717 = vst [vmem:[#allocation2 + $0xc0] sm:$0xff] %v685
        %718 = vst [vmem:[#allocation2 + $0xc8] sm:$0xff] %v686
        %719 = vst [vmem:[#allocation2 + $0xd0] sm:$0xff] %v687
        %720 = vst [vmem:[#allocation2 + $0xd8] sm:$0xff] %v688
        %721 = vst [vmem:[#allocation2 + $0xe0] sm:$0xff] %v689
        %722 = vst [vmem:[#allocation2 + $0xe8] sm:$0xff] %v690
        %723 = vst [vmem:[#allocation2 + $0xf0] sm:$0xff] %v691
        %724 = vst [vmem:[#allocation2 + $0xf8] sm:$0xff] %v692
        // Predicated region
        $region37: #{tpu_custom_call.1} parent=31 // pred_check
          %p725 = pneg %p255
        $region38: #{tpu_custom_call.1} parent=31 // pred_check_branch
          %727 = sbr.rel (%p725) target = $region40
        $region39: #{tpu_custom_call.1} parent=31 // pred_region
          %v728 = vld [vmem:[%s252] sm:$0x3]
          %v729 = vld [vmem:[#allocation2] sm:$0xff]
          %v730 = vld [vmem:[#allocation2 + $0x8] sm:$0xff]
          %v731 = vld [vmem:[#allocation2 + $0x10] sm:$0xff]
          %v732 = vld [vmem:[#allocation2 + $0x18] sm:$0xff]
          %v733 = vld [vmem:[#allocation2 + $0x20] sm:$0xff]
          %v734 = vld [vmem:[#allocation2 + $0x28] sm:$0xff]
          %v735 = vld [vmem:[#allocation2 + $0x30] sm:$0xff]
          %v736 = vld [vmem:[#allocation2 + $0x38] sm:$0xff]
          %v737 = vld [vmem:[#allocation2 + $0x40] sm:$0xff]
          %v738 = vld [vmem:[#allocation2 + $0x48] sm:$0xff]
          %v739 = vld [vmem:[#allocation2 + $0x50] sm:$0xff]
          %v740 = vld [vmem:[#allocation2 + $0x58] sm:$0xff]
          %v741 = vld [vmem:[#allocation2 + $0x60] sm:$0xff]
          %v742 = vld [vmem:[#allocation2 + $0x68] sm:$0xff]
          %v743 = vld [vmem:[#allocation2 + $0x70] sm:$0xff]
          %v744 = vld [vmem:[#allocation2 + $0x78] sm:$0xff]
          %v745 = vld [vmem:[#allocation2 + $0x80] sm:$0xff]
          %v746 = vld [vmem:[#allocation2 + $0x88] sm:$0xff]
          %v747 = vld [vmem:[#allocation2 + $0x90] sm:$0xff]
          %v748 = vld [vmem:[#allocation2 + $0x98] sm:$0xff]
          %v749 = vld [vmem:[#allocation2 + $0xa0] sm:$0xff]
          %v750 = vld [vmem:[#allocation2 + $0xa8] sm:$0xff]
          %v751 = vld [vmem:[#allocation2 + $0xb0] sm:$0xff]
          %v752 = vld [vmem:[#allocation2 + $0xb8] sm:$0xff]
          %v753 = vld [vmem:[#allocation2 + $0xc0] sm:$0xff]
          %v754 = vld [vmem:[#allocation2 + $0xc8] sm:$0xff]
          %v755 = vld [vmem:[#allocation2 + $0xd0] sm:$0xff]
          %v756 = vld [vmem:[#allocation2 + $0xd8] sm:$0xff]
          %v757 = vld [vmem:[#allocation2 + $0xe0] sm:$0xff]
          %v758 = vld [vmem:[#allocation2 + $0xe8] sm:$0xff]
          %v759 = vld [vmem:[#allocation2 + $0xf0] sm:$0xff]
          %v760 = vld [vmem:[#allocation2 + $0xf8] sm:$0xff]
          %v761 = vlaneseq
          %v762 = vshrl.u32 %v761, 7
          %v763 = vsub.s32 0, %v762
          %v764 = vrot.slane %v728, %v763
          %v765 = vmul.f32 %v729, %v764
          %v766 = vmul.f32 %v730, %v764
          %v767 = vmul.f32 %v731, %v764
          %v768 = vmul.f32 %v732, %v764
          %v769 = vmul.f32 %v733, %v764
          %v770 = vmul.f32 %v734, %v764
          %v771 = vmul.f32 %v735, %v764
          %v772 = vmul.f32 %v736, %v764
          %v773 = vmul.f32 %v737, %v764
          %v774 = vmul.f32 %v738, %v764
          %v775 = vmul.f32 %v739, %v764
          %v776 = vmul.f32 %v740, %v764
          %v777 = vmul.f32 %v741, %v764
          %v778 = vmul.f32 %v742, %v764
          %v779 = vmul.f32 %v743, %v764
          %v780 = vmul.f32 %v744, %v764
          %v781 = vmul.f32 %v745, %v764
          %v782 = vmul.f32 %v746, %v764
          %v783 = vmul.f32 %v747, %v764
          %v784 = vmul.f32 %v748, %v764
          %v785 = vmul.f32 %v749, %v764
          %v786 = vmul.f32 %v750, %v764
          %v787 = vmul.f32 %v751, %v764
          %v788 = vmul.f32 %v752, %v764
          %v789 = vmul.f32 %v753, %v764
          %v790 = vmul.f32 %v754, %v764
          %v791 = vmul.f32 %v755, %v764
          %v792 = vmul.f32 %v756, %v764
          %v793 = vmul.f32 %v757, %v764
          %v794 = vmul.f32 %v758, %v764
          %v795 = vmul.f32 %v759, %v764
          %v796 = vmul.f32 %v760, %v764
          %v797 = vlaneseq
          %v798 = vshrl.u32 %v797, 7
          %v799 = vsub.s32 1, %v798
          %v800 = vrot.slane %v728, %v799
          %v801 = vadd.f32 %v765, %v800
          %v802 = vadd.f32 %v766, %v800
          %v803 = vadd.f32 %v767, %v800
          %v804 = vadd.f32 %v768, %v800
          %v805 = vadd.f32 %v769, %v800
          %v806 = vadd.f32 %v770, %v800
          %v807 = vadd.f32 %v771, %v800
          %v808 = vadd.f32 %v772, %v800
          %v809 = vadd.f32 %v773, %v800
          %v810 = vadd.f32 %v774, %v800
          %v811 = vadd.f32 %v775, %v800
          %v812 = vadd.f32 %v776, %v800
          %v813 = vadd.f32 %v777, %v800
          %v814 = vadd.f32 %v778, %v800
          %v815 = vadd.f32 %v779, %v800
          %v816 = vadd.f32 %v780, %v800
          %v817 = vadd.f32 %v781, %v800
          %v818 = vadd.f32 %v782, %v800
          %v819 = vadd.f32 %v783, %v800
          %v820 = vadd.f32 %v784, %v800
          %v821 = vadd.f32 %v785, %v800
          %v822 = vadd.f32 %v786, %v800
          %v823 = vadd.f32 %v787, %v800
          %v824 = vadd.f32 %v788, %v800
          %v825 = vadd.f32 %v789, %v800
          %v826 = vadd.f32 %v790, %v800
          %v827 = vadd.f32 %v791, %v800
          %v828 = vadd.f32 %v792, %v800
          %v829 = vadd.f32 %v793, %v800
          %v830 = vadd.f32 %v794, %v800
          %v831 = vadd.f32 %v795, %v800
          %v832 = vadd.f32 %v796, %v800
          %v833 = vmax.f32 %v801, 0.0
          %v834 = vmax.f32 %v802, 0.0
          %v835 = vmax.f32 %v803, 0.0
          %v836 = vmax.f32 %v804, 0.0
          %v837 = vmax.f32 %v805, 0.0
          %v838 = vmax.f32 %v806, 0.0
          %v839 = vmax.f32 %v807, 0.0
          %v840 = vmax.f32 %v808, 0.0
          %v841 = vmax.f32 %v809, 0.0
          %v842 = vmax.f32 %v810, 0.0
          %v843 = vmax.f32 %v811, 0.0
          %v844 = vmax.f32 %v812, 0.0
          %v845 = vmax.f32 %v813, 0.0
          %v846 = vmax.f32 %v814, 0.0
          %v847 = vmax.f32 %v815, 0.0
          %v848 = vmax.f32 %v816, 0.0
          %v849 = vmax.f32 %v817, 0.0
          %v850 = vmax.f32 %v818, 0.0
          %v851 = vmax.f32 %v819, 0.0
          %v852 = vmax.f32 %v820, 0.0
          %v853 = vmax.f32 %v821, 0.0
          %v854 = vmax.f32 %v822, 0.0
          %v855 = vmax.f32 %v823, 0.0
          %v856 = vmax.f32 %v824, 0.0
          %v857 = vmax.f32 %v825, 0.0
          %v858 = vmax.f32 %v826, 0.0
          %v859 = vmax.f32 %v827, 0.0
          %v860 = vmax.f32 %v828, 0.0
          %v861 = vmax.f32 %v829, 0.0
          %v862 = vmax.f32 %v830, 0.0
          %v863 = vmax.f32 %v831, 0.0
          %v864 = vmax.f32 %v832, 0.0
          %v865 = vpack.c.bf16 %v834, %v833
          %v866 = vpack.c.bf16 %v836, %v835
          %v867 = vpack.c.bf16 %v838, %v837
          %v868 = vpack.c.bf16 %v840, %v839
          %v869 = vpack.c.bf16 %v842, %v841
          %v870 = vpack.c.bf16 %v844, %v843
          %v871 = vpack.c.bf16 %v846, %v845
          %v872 = vpack.c.bf16 %v848, %v847
          %v873 = vpack.c.bf16 %v850, %v849
          %v874 = vpack.c.bf16 %v852, %v851
          %v875 = vpack.c.bf16 %v854, %v853
          %v876 = vpack.c.bf16 %v856, %v855
          %v877 = vpack.c.bf16 %v858, %v857
          %v878 = vpack.c.bf16 %v860, %v859
          %v879 = vpack.c.bf16 %v862, %v861
          %v880 = vpack.c.bf16 %v864, %v863
          %v897 = vunpack.c.l.b16 %v865
          %v898 = vunpack.c.h.b16 %v865
          %v899 = vunpack.c.l.b16 %v866
          %v900 = vunpack.c.h.b16 %v866
          %v901 = vunpack.c.l.b16 %v867
          %v902 = vunpack.c.h.b16 %v867
          %v903 = vunpack.c.l.b16 %v868
          %v904 = vunpack.c.h.b16 %v868
          %v905 = vunpack.c.l.b16 %v869
          %v906 = vunpack.c.h.b16 %v869
          %v907 = vunpack.c.l.b16 %v870
          %v908 = vunpack.c.h.b16 %v870
          %v909 = vunpack.c.l.b16 %v871
          %v910 = vunpack.c.h.b16 %v871
          %v911 = vunpack.c.l.b16 %v872
          %v912 = vunpack.c.h.b16 %v872
          %v913 = vunpack.c.l.b16 %v873
          %v914 = vunpack.c.h.b16 %v873
          %v915 = vunpack.c.l.b16 %v874
          %v916 = vunpack.c.h.b16 %v874
          %v917 = vunpack.c.l.b16 %v875
          %v918 = vunpack.c.h.b16 %v875
          %v919 = vunpack.c.l.b16 %v876
          %v920 = vunpack.c.h.b16 %v876
          %v921 = vunpack.c.l.b16 %v877
          %v922 = vunpack.c.h.b16 %v877
          %v923 = vunpack.c.l.b16 %v878
          %v924 = vunpack.c.h.b16 %v878
          %v925 = vunpack.c.l.b16 %v879
          %v926 = vunpack.c.h.b16 %v879
          %v927 = vunpack.c.l.b16 %v880
          %v928 = vunpack.c.h.b16 %v880
          %v929 = vpack.c.b16 %v897, %v897
          %v930 = vpack.c.b16 %v898, %v898
          %v931 = vpack.c.b16 %v899, %v899
          %v932 = vpack.c.b16 %v900, %v900
          %v933 = vpack.c.b16 %v901, %v901
          %v934 = vpack.c.b16 %v902, %v902
          %v935 = vpack.c.b16 %v903, %v903
          %v936 = vpack.c.b16 %v904, %v904
          %v937 = vpack.c.b16 %v905, %v905
          %v938 = vpack.c.b16 %v906, %v906
          %v939 = vpack.c.b16 %v907, %v907
          %v940 = vpack.c.b16 %v908, %v908
          %v941 = vpack.c.b16 %v909, %v909
          %v942 = vpack.c.b16 %v910, %v910
          %v943 = vpack.c.b16 %v911, %v911
          %v944 = vpack.c.b16 %v912, %v912
          %v945 = vpack.c.b16 %v913, %v913
          %v946 = vpack.c.b16 %v914, %v914
          %v947 = vpack.c.b16 %v915, %v915
          %v948 = vpack.c.b16 %v916, %v916
          %v949 = vpack.c.b16 %v917, %v917
          %v950 = vpack.c.b16 %v918, %v918
          %v951 = vpack.c.b16 %v919, %v919
          %v952 = vpack.c.b16 %v920, %v920
          %v953 = vpack.c.b16 %v921, %v921
          %v954 = vpack.c.b16 %v922, %v922
          %v955 = vpack.c.b16 %v923, %v923
          %v956 = vpack.c.b16 %v924, %v924
          %v957 = vpack.c.b16 %v925, %v925
          %v958 = vpack.c.b16 %v926, %v926
          %v959 = vpack.c.b16 %v927, %v927
          %v960 = vpack.c.b16 %v928, %v928
          %993 = vst [vmem:[%s230] sm:$0xf] %v929
          %994 = vst [vmem:[%s230 + $0x4] sm:$0xf] %v930
          %995 = vst [vmem:[%s230 + $0x8] sm:$0xf] %v931
          %996 = vst [vmem:[%s230 + $0xc] sm:$0xf] %v932
          %997 = vst [vmem:[%s230 + $0x10] sm:$0xf] %v933
          %998 = vst [vmem:[%s230 + $0x14] sm:$0xf] %v934
          %999 = vst [vmem:[%s230 + $0x18] sm:$0xf] %v935
          %1000 = vst [vmem:[%s230 + $0x1c] sm:$0xf] %v936
          %1001 = vst [vmem:[%s230 + $0x20] sm:$0xf] %v937
          %1002 = vst [vmem:[%s230 + $0x24] sm:$0xf] %v938
          %1003 = vst [vmem:[%s230 + $0x28] sm:$0xf] %v939
          %1004 = vst [vmem:[%s230 + $0x2c] sm:$0xf] %v940
          %1005 = vst [vmem:[%s230 + $0x30] sm:$0xf] %v941
          %1006 = vst [vmem:[%s230 + $0x34] sm:$0xf] %v942
          %1007 = vst [vmem:[%s230 + $0x38] sm:$0xf] %v943
          %1008 = vst [vmem:[%s230 + $0x3c] sm:$0xf] %v944
          %1009 = vst [vmem:[%s230 + $0x40] sm:$0xf] %v945
          %1010 = vst [vmem:[%s230 + $0x44] sm:$0xf] %v946
          %1011 = vst [vmem:[%s230 + $0x48] sm:$0xf] %v947
          %1012 = vst [vmem:[%s230 + $0x4c] sm:$0xf] %v948
          %1013 = vst [vmem:[%s230 + $0x50] sm:$0xf] %v949
          %1014 = vst [vmem:[%s230 + $0x54] sm:$0xf] %v950
          %1015 = vst [vmem:[%s230 + $0x58] sm:$0xf] %v951
          %1016 = vst [vmem:[%s230 + $0x5c] sm:$0xf] %v952
          %1017 = vst [vmem:[%s230 + $0x60] sm:$0xf] %v953
          %1018 = vst [vmem:[%s230 + $0x64] sm:$0xf] %v954
          %1019 = vst [vmem:[%s230 + $0x68] sm:$0xf] %v955
          %1020 = vst [vmem:[%s230 + $0x6c] sm:$0xf] %v956
          %1021 = vst [vmem:[%s230 + $0x70] sm:$0xf] %v957
          %1022 = vst [vmem:[%s230 + $0x74] sm:$0xf] %v958
          %1023 = vst [vmem:[%s230 + $0x78] sm:$0xf] %v959
          %1024 = vst [vmem:[%s230 + $0x7c] sm:$0xf] %v960
        $region40: #{tpu_custom_call.1} parent=31 // pred_fallthru
          _
        %s1025 = sand.u32 %s128, 1
        %s1026 = scalar_lea.sflag [#allocation4], %s1025
        %s1027 = sand.u32 %s128, 1
        %s1028 = smul.addr %s1027, 128
        %s1029 = scalar_lea.vmem [#allocation3], %s1028
        // Predicated region
        $region41: #{tpu_custom_call.1} parent=31 // pred_check
          %p1030 = pneg %p138
        $region42: #{tpu_custom_call.1} parent=31 // pred_check_branch
          %1032 = sbr.rel (%p1030) target = $region44
        $region43: #{tpu_custom_call.1} parent=31 // pred_region
          %s1033 = smul.u32 32, %s22
          %s1035 = ssub.s32 2048, 2048
          %1036 = vsyncadd %s1026, %s1035
          %s1037 = sadd.s32 %s23, %s1033
          %s1038 = smul.addr %s1037, 64
          %s1039 = scalar_lea.hbm %s3, %s1038
          %s1040 = sshll.u32 %s1029, 4
          %s1041 = int_to_ptr.vmem [resolvable:$true] %s1040
          %1046 = dma.vmem_to_hbm [thread:$0]  %s1041, 2048, %s1039, %s1026, 64, 64, 4
        $region44: #{tpu_custom_call.1} parent=31 // pred_fallthru
          _
      $region32: #{tpu_custom_call.1} parent=5 // pred_fallthru
        _
      %p1047 = scmp.le.s32.totalorder 2, %s12
      // Predicated region
      $region45: #{tpu_custom_call.1} parent=5 // pred_check
        %p1048 = pneg %p1047
      $region46: #{tpu_custom_call.1} parent=5 // pred_check_branch
        %1050 = sbr.rel (%p1048) target = $region48
      $region47: #{tpu_custom_call.1} parent=5 // pred_region
        %s1051 = ssub.s32 %s12, 2
        // Predicated region
        $region49: #{tpu_custom_call.1} parent=47 // pred_check
          %p1052 = pneg %p144
        $region50: #{tpu_custom_call.1} parent=47 // pred_check_branch
          %1054 = sbr.rel (%p1052) target = $region52
        $region51: #{tpu_custom_call.1} parent=47 // pred_region
          %s1055 = sand.u32 %s129, 1
          %s1056 = scalar_lea.sflag [#allocation4], %s1055
          %s1057 = sand.u32 %s129, 1
          %s1058 = smul.addr %s1057, 128
          %s1059 = scalar_lea.vmem [#allocation3], %s1058
          %1060 = dma.done %s1056, 2048
        $region52: #{tpu_custom_call.1} parent=47 // pred_fallthru
          _
      $region48: #{tpu_custom_call.1} parent=5 // pred_fallthru
        _
    $region6: #{tpu_custom_call.1} parent=1 // loop_footer
      %s16 = sadd.s32 1, %s12
    $region7: #{tpu_custom_call.1} parent=1 // loop_footer_branch
      %11 = sbr.rel target = $region3
    $region8: #{tpu_custom_call.1} parent=1 // loop_exit
      _
    %1061 = vsyncpa [#allocation4], 1
    %s1062 = scalar_lea.sflag [#allocation4], 1
    %1063 = vsyncpa %s1062, 1

</llo_original>
